<compile_context>
chip_gen: v5e
topology: v5e:2x2
jax: 0.10.0
libtpu: 0.0.40
codegen_flags: <defaults>
</compile_context>

<pallas_src>
import functools
from typing import NamedTuple

import jax
import jax.numpy as jnp
from jax.experimental import pallas as pl
from jax.experimental.pallas import tpu as pltpu


def capsule_kernel(x_ref, delxy_ref,
                   wcp_ref, bcp_ref,
                   wxypr_ref, bxypr_ref,
                   wgn_ref, bgn_ref,
                   wrc_ref, brc_ref,
                   out_ref, *xy_refs,
                   xy_dim):
    # cap = sigmoid(X @ Wcp + bcp). X lives in HBM as f32; cast to bf16 at the
    # load (no wrapper-side materialization), accumulate in f32 on the MXU.
    x_bf16 = x_ref[...].astype(jnp.bfloat16)
    cap = jax.nn.sigmoid(
        jnp.dot(x_bf16, wcp_ref[...], preferred_element_type=jnp.float32)
        + bcp_ref[...])                                    # (Bt, cpdim) f32

    # Fused x_y | prb heads: one (cpdim, xy_dim+1) matmul instead of two
    # tiny-N passes.
    xypr = (jnp.dot(cap, wxypr_ref[...], preferred_element_type=jnp.float32)
            + bxypr_ref[...])                              # (Bt, xy_dim+1)
    x_y = xypr[:, :xy_dim]                                 # (Bt, xy_dim)
    prb = xypr[:, xy_dim:xy_dim + 1]                       # (Bt, 1)

    # gen = (x_y + delxy) @ Wgn + bgn as a VPU outer product (K == xy_dim is
    # tiny; avoids an almost-empty MXU push/pop).
    xd = x_y + delxy_ref[...]                              # (Bt, xy_dim) f32
    gen = bgn_ref[...]                                     # (1, gndim) -> broadcasts
    for k in range(xy_dim):                                # static unroll
        gen = gen + xd[:, k:k + 1] * wgn_ref[k:k + 1, :]   # (Bt, gndim)

    # rec = gen @ Wrc + brc   (bf16 weight, f32 accumulation)
    rec = (jnp.dot(gen.astype(wrc_ref.dtype), wrc_ref[...],
                   preferred_element_type=jnp.float32)
           + brc_ref[...])                                 # (Bt, indim) f32

    out_ref[...] = (rec * prb).astype(out_ref.dtype)       # broadcast over last dim
    if xy_refs:                                            # only in the sp=True variant
        xy_refs[0][...] = x_y.astype(xy_refs[0].dtype)


class PreparedParams(NamedTuple):
    """Weights preprocessed once (not per forward call)."""
    wcp: jax.Array     # (indim, cpdim) bf16
    bcp: jax.Array     # (1, cpdim)     f32
    wxypr: jax.Array   # (cpdim, xy_dim+1) f32  -- fused xy|pr heads
    bxypr: jax.Array   # (1, xy_dim+1)  f32
    wgn: jax.Array     # (xy_dim, gndim) f32
    bgn: jax.Array     # (1, gndim)     f32
    wrc: jax.Array     # (gndim, indim) bf16
    brc: jax.Array     # (1, indim)     f32


def prepare_params(params):
    """Hoisted weight preprocessing: call once at init / param-update time."""
    (wcp, bcp, wxy, bxy, wpr, bpr, wgn, bgn, wrc, brc) = params
    return PreparedParams(
        wcp=wcp.astype(jnp.bfloat16),
        bcp=bcp.astype(jnp.float32),
        wxypr=jnp.concatenate([wxy, wpr], axis=1).astype(jnp.float32),
        bxypr=jnp.concatenate([bxy, bpr], axis=1).astype(jnp.float32),
        wgn=wgn.astype(jnp.float32),
        bgn=bgn.astype(jnp.float32),
        wrc=wrc.astype(jnp.bfloat16),
        brc=brc.astype(jnp.float32),
    )


def _pick_tile(B, block_b):
    """Batch tile: big enough to amortize per-step overhead, small enough to
    (a) stay inside v7x's 64 MiB VMEM and (b) leave >=2 grid steps for
    megacore sharding on moderate batches. Rounded to a multiple of 16 so
    bf16-packed operands fill (16, 128) tiles."""
    if B <= 16:
        return 16
    target = min(block_b, max(256, (B + 1) // 2))
    bt = ((target + 15) // 16) * 16
    return min(bt, ((B + 15) // 16) * 16)


def capsule_forward(X, delxy, params, sp=False, *, block_b=1024,
                    out_dtype=jnp.float32,
                    vmem_limit_bytes=48 * 1024 * 1024):
    """X: (B, 28, 28) or (B, 784); delxy: (B, xy_dim).

    `params` may be a raw 10-tuple (prepared on the fly) or a PreparedParams
    (preferred when calling in a loop). Set out_dtype=jnp.bfloat16 if the
    consumer tolerates bf16 output (halves the dominant HBM write term).
    """
    if not isinstance(params, PreparedParams):
        params = prepare_params(params)

    indim = 28 * 28
    x2d = X.reshape(-1, indim)          # keep caller dtype; kernel casts to bf16
    B = x2d.shape[0]

    cpdim = params.wcp.shape[1]
    xy_dim = params.wxypr.shape[1] - 1
    gndim = params.wgn.shape[1]

    delxy_f32 = delxy.astype(jnp.float32)

    # Batch tiling: pick the tile, pad ragged batch (only when needed),
    # build the grid.
    bt = _pick_tile(B, block_b)
    b_pad = pl.cdiv(B, bt) * bt
    if b_pad != B:
        x2d = jnp.pad(x2d, ((0, b_pad - B), (0, 0)))
        delxy_f32 = jnp.pad(delxy_f32, ((0, b_pad - B), (0, 0)))
    grid = (b_pad // bt,)

    def batch_spec(feat):
        return pl.BlockSpec((bt, feat), lambda i: (i, 0))

    def const_spec(shape):
        return pl.BlockSpec(shape, lambda i: (0, 0))

    if sp:
        out_shape = (jax.ShapeDtypeStruct((b_pad, indim), out_dtype),
                     jax.ShapeDtypeStruct((b_pad, xy_dim), jnp.float32))
        out_specs = (batch_spec(indim), batch_spec(xy_dim))
    else:
        out_shape = jax.ShapeDtypeStruct((b_pad, indim), out_dtype)
        out_specs = batch_spec(indim)

    out_bytes = jnp.dtype(out_dtype).itemsize
    x_bytes = jnp.dtype(x2d.dtype).itemsize
    flops = 2 * b_pad * (indim * cpdim + cpdim * (xy_dim + 1)
                         + xy_dim * gndim + gndim * indim)
    bytes_accessed = (b_pad * indim * x_bytes + delxy_f32.size * 4
                      + b_pad * indim * out_bytes
                      + (b_pad * xy_dim * 4 if sp else 0)
                      + params.wcp.size * 2 + params.wrc.size * 2
                      + (params.wxypr.size + params.bxypr.size
                         + params.wgn.size + params.bcp.size
                         + params.bgn.size + params.brc.size) * 4)

    kernel = functools.partial(capsule_kernel, xy_dim=xy_dim)

    result = pl.pallas_call(
        kernel,
        grid=grid,
        out_shape=out_shape,
        in_specs=[
            batch_spec(indim),                     # X (tiled over batch)
            batch_spec(xy_dim),                    # delxy (tiled over batch)
            const_spec(params.wcp.shape), const_spec(params.bcp.shape),
            const_spec(params.wxypr.shape), const_spec(params.bxypr.shape),
            const_spec(params.wgn.shape), const_spec(params.bgn.shape),
            const_spec(params.wrc.shape), const_spec(params.brc.shape),
        ],
        out_specs=out_specs,
        compiler_params=pltpu.CompilerParams(
            dimension_semantics=("parallel",),
            vmem_limit_bytes=vmem_limit_bytes),
        cost_estimate=pl.CostEstimate(
            flops=flops,
            transcendentals=b_pad * cpdim,
            bytes_accessed=bytes_accessed),
    )(x2d, delxy_f32,
      params.wcp, params.bcp, params.wxypr, params.bxypr,
      params.wgn, params.bgn, params.wrc, params.brc)

    if sp:
        out, x_y = result
        return out[:B], x_y[:B]
    return result[:B]


def init_params(key, input_dim, cap_dim, gen_dim, xy_dim=2):
    """Deterministic init; weights stored as (in, out), biases as (1, out)."""
    ks = jax.random.split(key, 10)

    def linear(kw, kb, fan_in, fan_out):
        bound = 1.0 / jnp.sqrt(fan_in)
        w = jax.random.uniform(kw, (fan_in, fan_out), jnp.float32, -bound, bound)
        b = jax.random.uniform(kb, (1, fan_out), jnp.float32, -bound, bound)
        return w, b

    wcp, bcp = linear(ks[0], ks[1], input_dim, cap_dim)
    wxy, bxy = linear(ks[2], ks[3], cap_dim, xy_dim)
    wpr, bpr = linear(ks[4], ks[5], cap_dim, 1)
    wgn, bgn = linear(ks[6], ks[7], xy_dim, gen_dim)
    wrc, brc = linear(ks[8], ks[9], gen_dim, input_dim)
    return (wcp, bcp, wxy, bxy, wpr, bpr, wgn, bgn, wrc, brc)


def capsule_reference(X, delxy, params):
    """Pure-JAX f32 reference mirroring the PyTorch forward (sp=False)."""
    (wcp, bcp, wxy, bxy, wpr, bpr, wgn, bgn, wrc, brc) = params
    x = X.reshape(-1, 28 * 28).astype(jnp.float32)
    cap = jax.nn.sigmoid(x @ wcp + bcp)
    x_y = cap @ wxy + bxy
    prb = cap @ wpr + bpr
    gen = (x_y + delxy) @ wgn + bgn
    rec = gen @ wrc + brc
    return rec * prb, x_y


if __name__ == "__main__":
    key = jax.random.PRNGKey(0)
    k_x, k_d, k_p = jax.random.split(key, 3)

    B = 2
    input_dim, cap_dim, gen_dim, xy_dim = 28 * 28, 32, 64, 2

    X = jax.random.normal(k_x, (B, 28, 28), jnp.float32)
    delxy = jax.random.normal(k_d, (B, xy_dim), jnp.float32)
    params = init_params(k_p, input_dim, cap_dim, gen_dim, xy_dim)
    prepared = prepare_params(params)       # once, outside the call loop

    ref_out, ref_xy = capsule_reference(X, delxy, params)

    # sp=False path (single output, f32 out).
    out = capsule_forward(X, delxy, prepared, sp=False)
    out = jax.block_until_ready(out)
    assert out.shape == (B, input_dim)
    # bf16 MXU inputs (f32 accumulation) -> bf16-aware tolerance vs f32 ref.
    assert jnp.allclose(out, ref_out, atol=2e-2, rtol=2e-2)

    # sp=True path returns (rec*prb, x_y).
    out_sp, x_y = capsule_forward(X, delxy, prepared, sp=True)
    jax.block_until_ready((out_sp, x_y))
    assert x_y.shape == (B, xy_dim)
    assert jnp.allclose(out_sp, ref_out, atol=2e-2, rtol=2e-2)
    assert jnp.allclose(x_y, ref_xy, atol=2e-2, rtol=2e-2)

    # Optional bf16-output path (consumer-tolerant case).
    out_bf16 = capsule_forward(X, delxy, prepared, sp=False,
                               out_dtype=jnp.bfloat16)
    out_bf16 = jax.block_until_ready(out_bf16)
    assert out_bf16.dtype == jnp.bfloat16
    assert jnp.allclose(out_bf16.astype(jnp.float32), ref_out,
                        atol=4e-2, rtol=4e-2)

    print("KERNEL_OK")
</pallas_src>

<mosaic_0001>
module attributes {stable_mosaic.version = 11 : i64} {
  func.func @capsule_kernel(%arg0: i32, %arg1: memref<16x784xf32, #tpu.memory_space<vmem>>, %arg2: memref<16x2xf32, #tpu.memory_space<vmem>>, %arg3: memref<784x32xbf16, #tpu.memory_space<vmem>>, %arg4: memref<1x32xf32, #tpu.memory_space<vmem>>, %arg5: memref<32x3xf32, #tpu.memory_space<vmem>>, %arg6: memref<1x3xf32, #tpu.memory_space<vmem>>, %arg7: memref<2x64xf32, #tpu.memory_space<vmem>>, %arg8: memref<1x64xf32, #tpu.memory_space<vmem>>, %arg9: memref<64x784xbf16, #tpu.memory_space<vmem>>, %arg10: memref<1x784xf32, #tpu.memory_space<vmem>>, %arg11: memref<16x784xf32, #tpu.memory_space<vmem>>) attributes {dimension_semantics = [#tpu.dimension_semantics<parallel>], iteration_bounds = array<i64: 1>, scalar_prefetch = 0 : i64, scratch_operands = 0 : i64, tpu.core_type = #tpu.core_type<tc>, window_params = [{transform_indices = @transform_0, window_bounds = array<i64: 16, 784>}, {transform_indices = @transform_1, window_bounds = array<i64: 16, 2>}, {pipeline_mode = #tpu.pipeline_mode<synchronous>, transform_indices = @transform_2, window_bounds = array<i64: 784, 32>}, {pipeline_mode = #tpu.pipeline_mode<synchronous>, transform_indices = @transform_3, window_bounds = array<i64: 1, 32>}, {pipeline_mode = #tpu.pipeline_mode<synchronous>, transform_indices = @transform_4, window_bounds = array<i64: 32, 3>}, {pipeline_mode = #tpu.pipeline_mode<synchronous>, transform_indices = @transform_5, window_bounds = array<i64: 1, 3>}, {pipeline_mode = #tpu.pipeline_mode<synchronous>, transform_indices = @transform_6, window_bounds = array<i64: 2, 64>}, {pipeline_mode = #tpu.pipeline_mode<synchronous>, transform_indices = @transform_7, window_bounds = array<i64: 1, 64>}, {pipeline_mode = #tpu.pipeline_mode<synchronous>, transform_indices = @transform_8, window_bounds = array<i64: 64, 784>}, {pipeline_mode = #tpu.pipeline_mode<synchronous>, transform_indices = @transform_9, window_bounds = array<i64: 1, 784>}, {transform_indices = @transform_10, window_bounds = array<i64: 16, 784>}]} {
    %c0 = arith.constant 0 : index
    %c0_0 = arith.constant 0 : index
    %0 = vector.load %arg1[%c0, %c0_0] : memref<16x784xf32, #tpu.memory_space<vmem>>, vector<16x784xf32>
    %1 = arith.truncf %0 : vector<16x784xf32> to vector<16x784xbf16>
    %c0_1 = arith.constant 0 : index
    %c0_2 = arith.constant 0 : index
    %2 = vector.load %arg3[%c0_1, %c0_2] : memref<784x32xbf16, #tpu.memory_space<vmem>>, vector<784x32xbf16>
    %cst = arith.constant dense<0.000000e+00> : vector<16x32xf32>
    %3 = tpu.matmul %1, %2, %cst {dimension_numbers = #tpu.dot_dimension_numbers<[1], [0], [0], [1], [0, 0, 1, 1], [], []>} : vector<16x784xbf16>, vector<784x32xbf16>, vector<16x32xf32> -> vector<16x32xf32>
    %c0_3 = arith.constant 0 : index
    %c0_4 = arith.constant 0 : index
    %4 = vector.load %arg4[%c0_3, %c0_4] : memref<1x32xf32, #tpu.memory_space<vmem>>, vector<1x32xf32>
    %5 = vector.broadcast %4 : vector<1x32xf32> to vector<16x32xf32>
    %6 = arith.addf %3, %5 : vector<16x32xf32>
    %7 = arith.negf %6 : vector<16x32xf32>
    %8 = math.exp %7 : vector<16x32xf32>
    %cst_5 = arith.constant 1.000000e+00 : f32
    %9 = vector.broadcast %cst_5 : f32 to vector<16x32xf32>
    %10 = arith.addf %9, %8 : vector<16x32xf32>
    %11 = arith.divf %9, %10 : vector<16x32xf32>
    %c0_6 = arith.constant 0 : index
    %c0_7 = arith.constant 0 : index
    %12 = vector.load %arg5[%c0_6, %c0_7] : memref<32x3xf32, #tpu.memory_space<vmem>>, vector<32x3xf32>
    %cst_8 = arith.constant dense<0.000000e+00> : vector<16x3xf32>
    %13 = tpu.matmul %11, %12, %cst_8 {dimension_numbers = #tpu.dot_dimension_numbers<[1], [0], [0], [1], [0, 0, 1, 1], [], []>} : vector<16x32xf32>, vector<32x3xf32>, vector<16x3xf32> -> vector<16x3xf32>
    %c0_9 = arith.constant 0 : index
    %c0_10 = arith.constant 0 : index
    %14 = vector.load %arg6[%c0_9, %c0_10] : memref<1x3xf32, #tpu.memory_space<vmem>>, vector<1x3xf32>
    %15 = vector.broadcast %14 : vector<1x3xf32> to vector<16x3xf32>
    %16 = arith.addf %13, %15 : vector<16x3xf32>
    %17 = vector.extract_strided_slice %16 {offsets = [0, 0], sizes = [16, 2], strides = [1, 1]} : vector<16x3xf32> to vector<16x2xf32>
    %18 = vector.extract_strided_slice %16 {offsets = [0, 2], sizes = [16, 1], strides = [1, 1]} : vector<16x3xf32> to vector<16x1xf32>
    %c0_11 = arith.constant 0 : index
    %c0_12 = arith.constant 0 : index
    %19 = vector.load %arg2[%c0_11, %c0_12] : memref<16x2xf32, #tpu.memory_space<vmem>>, vector<16x2xf32>
    %20 = arith.addf %17, %19 : vector<16x2xf32>
    %c0_13 = arith.constant 0 : index
    %c0_14 = arith.constant 0 : index
    %21 = vector.load %arg8[%c0_13, %c0_14] : memref<1x64xf32, #tpu.memory_space<vmem>>, vector<1x64xf32>
    %22 = vector.extract_strided_slice %20 {offsets = [0, 0], sizes = [16, 1], strides = [1, 1]} : vector<16x2xf32> to vector<16x1xf32>
    %c0_15 = arith.constant 0 : index
    %c0_16 = arith.constant 0 : index
    %23 = vector.load %arg7[%c0_15, %c0_16] : memref<2x64xf32, #tpu.memory_space<vmem>>, vector<1x64xf32>
    %24 = vector.broadcast %22 : vector<16x1xf32> to vector<16x64xf32>
    %25 = vector.broadcast %23 : vector<1x64xf32> to vector<16x64xf32>
    %26 = arith.mulf %24, %25 : vector<16x64xf32>
    %27 = vector.broadcast %21 : vector<1x64xf32> to vector<16x64xf32>
    %28 = arith.addf %27, %26 : vector<16x64xf32>
    %29 = vector.extract_strided_slice %20 {offsets = [0, 1], sizes = [16, 1], strides = [1, 1]} : vector<16x2xf32> to vector<16x1xf32>
    %c1 = arith.constant 1 : index
    %c0_17 = arith.constant 0 : index
    %30 = vector.load %arg7[%c1, %c0_17] : memref<2x64xf32, #tpu.memory_space<vmem>>, vector<1x64xf32>
    %31 = vector.broadcast %29 : vector<16x1xf32> to vector<16x64xf32>
    %32 = vector.broadcast %30 : vector<1x64xf32> to vector<16x64xf32>
    %33 = arith.mulf %31, %32 : vector<16x64xf32>
    %34 = arith.addf %28, %33 : vector<16x64xf32>
    %35 = arith.truncf %34 : vector<16x64xf32> to vector<16x64xbf16>
    %c0_18 = arith.constant 0 : index
    %c0_19 = arith.constant 0 : index
    %36 = vector.load %arg9[%c0_18, %c0_19] : memref<64x784xbf16, #tpu.memory_space<vmem>>, vector<64x784xbf16>
    %cst_20 = arith.constant dense<0.000000e+00> : vector<16x784xf32>
    %37 = tpu.matmul %35, %36, %cst_20 {dimension_numbers = #tpu.dot_dimension_numbers<[1], [0], [0], [1], [0, 0, 1, 1], [], []>} : vector<16x64xbf16>, vector<64x784xbf16>, vector<16x784xf32> -> vector<16x784xf32>
    %c0_21 = arith.constant 0 : index
    %c0_22 = arith.constant 0 : index
    %38 = vector.load %arg10[%c0_21, %c0_22] : memref<1x784xf32, #tpu.memory_space<vmem>>, vector<1x784xf32>
    %39 = vector.broadcast %38 : vector<1x784xf32> to vector<16x784xf32>
    %40 = arith.addf %37, %39 : vector<16x784xf32>
    %41 = vector.broadcast %18 : vector<16x1xf32> to vector<16x784xf32>
    %42 = arith.mulf %40, %41 : vector<16x784xf32>
    %c0_23 = arith.constant 0 : index
    %c0_24 = arith.constant 0 : index
    %43 = vector.load %arg11[%c0_23, %c0_24] : memref<16x784xf32, #tpu.memory_space<vmem>>, vector<16x784xf32>
    tpu.vector_store %arg11[%c0_23, %c0_24], %42 {strides = array<i32>} : memref<16x784xf32, #tpu.memory_space<vmem>>, vector<16x784xf32>,
    return
  }
  func.func @transform_0(%arg0: i32) -> (i32, i32) {
    %c0_i32 = arith.constant 0 : i32
    %c0_i32_0 = arith.constant 0 : i32
    return %arg0, %c0_i32 : i32, i32
  }
  func.func @transform_1(%arg0: i32) -> (i32, i32) {
    %c0_i32 = arith.constant 0 : i32
    %c0_i32_0 = arith.constant 0 : i32
    return %arg0, %c0_i32 : i32, i32
  }
  func.func @transform_2(%arg0: i32) -> (i32, i32) {
    %c0_i32 = arith.constant 0 : i32
    %c0_i32_0 = arith.constant 0 : i32
    %c0_i32_1 = arith.constant 0 : i32
    return %c0_i32, %c0_i32_0 : i32, i32
  }
  func.func @transform_3(%arg0: i32) -> (i32, i32) {
    %c0_i32 = arith.constant 0 : i32
    %c0_i32_0 = arith.constant 0 : i32
    %c0_i32_1 = arith.constant 0 : i32
    return %c0_i32, %c0_i32_0 : i32, i32
  }
  func.func @transform_4(%arg0: i32) -> (i32, i32) {
    %c0_i32 = arith.constant 0 : i32
    %c0_i32_0 = arith.constant 0 : i32
    %c0_i32_1 = arith.constant 0 : i32
    return %c0_i32, %c0_i32_0 : i32, i32
  }
  func.func @transform_5(%arg0: i32) -> (i32, i32) {
    %c0_i32 = arith.constant 0 : i32
    %c0_i32_0 = arith.constant 0 : i32
    %c0_i32_1 = arith.constant 0 : i32
    return %c0_i32, %c0_i32_0 : i32, i32
  }
  func.func @transform_6(%arg0: i32) -> (i32, i32) {
    %c0_i32 = arith.constant 0 : i32
    %c0_i32_0 = arith.constant 0 : i32
    %c0_i32_1 = arith.constant 0 : i32
    return %c0_i32, %c0_i32_0 : i32, i32
  }
  func.func @transform_7(%arg0: i32) -> (i32, i32) {
    %c0_i32 = arith.constant 0 : i32
    %c0_i32_0 = arith.constant 0 : i32
    %c0_i32_1 = arith.constant 0 : i32
    return %c0_i32, %c0_i32_0 : i32, i32
  }
  func.func @transform_8(%arg0: i32) -> (i32, i32) {
    %c0_i32 = arith.constant 0 : i32
    %c0_i32_0 = arith.constant 0 : i32
    %c0_i32_1 = arith.constant 0 : i32
    return %c0_i32, %c0_i32_0 : i32, i32
  }
  func.func @transform_9(%arg0: i32) -> (i32, i32) {
    %c0_i32 = arith.constant 0 : i32
    %c0_i32_0 = arith.constant 0 : i32
    %c0_i32_1 = arith.constant 0 : i32
    return %c0_i32, %c0_i32_0 : i32, i32
  }
  func.func @transform_10(%arg0: i32) -> (i32, i32) {
    %c0_i32 = arith.constant 0 : i32
    %c0_i32_0 = arith.constant 0 : i32
    return %arg0, %c0_i32 : i32, i32
  }
}

</mosaic_0001>

<llo_original>
// kernel: tpu_custom_call.1
$region0: #{tpu_custom_call.1}
  #allocation0 [shape = 'u32[]', space=smem, size = 0x4, offset = 0x4, fixed_abs, tag = 'smem constant byte address 0x4 - core index']
  #allocation1 [shape = 'u32[72,128]{1,0:T(1,128)}', space=vmem, size = 0x9000, scoped, tag = 'internal scratch']
  %s0 = inlined_call_operand.vmem [shape: f32[16,784], index: 0, kind: input, shape index: {}]
  %s1 = inlined_call_operand.vmem [shape: f32[16,2], index: 1, kind: input, shape index: {}]
  %s2 = inlined_call_operand.vmem [shape: bf16[784,32], index: 2, kind: input, shape index: {}]
  %s3 = inlined_call_operand.vmem [shape: f32[1,32], index: 3, kind: input, shape index: {}]
  %s4 = inlined_call_operand.vmem [shape: f32[32,3], index: 4, kind: input, shape index: {}]
  %s5 = inlined_call_operand.vmem [shape: f32[1,3], index: 5, kind: input, shape index: {}]
  %s6 = inlined_call_operand.vmem [shape: f32[2,64], index: 6, kind: input, shape index: {}]
  %s7 = inlined_call_operand.vmem [shape: f32[1,64], index: 7, kind: input, shape index: {}]
  %s8 = inlined_call_operand.vmem [shape: bf16[64,784], index: 8, kind: input, shape index: {}]
  %s9 = inlined_call_operand.vmem [shape: f32[1,784], index: 9, kind: input, shape index: {}]
  %s10 = inlined_call_operand.hbm [shape: f32[16,784], index: 10, kind: output, shape index: {}]
  %s11 = sld [smem:[#allocation0]]
  $region50: #{tpu_custom_call.1} parent=0
    _
  %s13 = ssub.s32 1, %s11
  %s14 = scalar_select 0, %s13, %s11
  $region1: #{tpu_custom_call.1} parent=0
    #allocation2 [shape = 'u8[57344]{0}', space=vmem, size = 0xe000, scoped, tag = 'output window, operand 0, single buffered']
    #allocation3 [shape = 's32[1]{0}', space=sflag, size = 0x4, scoped, tag = 'scoped memory for tpu_custom_call.1']
    %15 = vsyncpa [#allocation3], 0
    // Predicated region
    $region2: #{tpu_custom_call.1} parent=1 // pred_check
      _
    $region3: #{tpu_custom_call.1} parent=1 // pred_check_branch
      %17 = sbr.rel (0) target = $region5
    $region4: #{tpu_custom_call.1} parent=1 // pred_region
      _
    $region5: #{tpu_custom_call.1} parent=1 // pred_fallthru
      _
    // Predicated region
    $region6: #{tpu_custom_call.1} parent=1 // pred_check
      _
    $region7: #{tpu_custom_call.1} parent=1 // pred_check_branch
      %19 = sbr.rel (0) target = $region9
    $region8: #{tpu_custom_call.1} parent=1 // pred_region
      _
    $region9: #{tpu_custom_call.1} parent=1 // pred_fallthru
      _
    // Predicated region
    $region10: #{tpu_custom_call.1} parent=1 // pred_check
      _
    $region11: #{tpu_custom_call.1} parent=1 // pred_check_branch
      %21 = sbr.rel (0) target = $region13
    $region12: #{tpu_custom_call.1} parent=1 // pred_region
      _
    $region13: #{tpu_custom_call.1} parent=1 // pred_fallthru
      _
    // Predicated region
    $region14: #{tpu_custom_call.1} parent=1 // pred_check
      _
    $region15: #{tpu_custom_call.1} parent=1 // pred_check_branch
      %23 = sbr.rel (0) target = $region17
    $region16: #{tpu_custom_call.1} parent=1 // pred_region
      _
    $region17: #{tpu_custom_call.1} parent=1 // pred_fallthru
      _
    // Predicated region
    $region18: #{tpu_custom_call.1} parent=1 // pred_check
      _
    $region19: #{tpu_custom_call.1} parent=1 // pred_check_branch
      %25 = sbr.rel (0) target = $region21
    $region20: #{tpu_custom_call.1} parent=1 // pred_region
      _
    $region21: #{tpu_custom_call.1} parent=1 // pred_fallthru
      _
    // Predicated region
    $region22: #{tpu_custom_call.1} parent=1 // pred_check
      _
    $region23: #{tpu_custom_call.1} parent=1 // pred_check_branch
      %27 = sbr.rel (0) target = $region25
    $region24: #{tpu_custom_call.1} parent=1 // pred_region
      _
    $region25: #{tpu_custom_call.1} parent=1 // pred_fallthru
      _
    // Predicated region
    $region26: #{tpu_custom_call.1} parent=1 // pred_check
      _
    $region27: #{tpu_custom_call.1} parent=1 // pred_check_branch
      %29 = sbr.rel (0) target = $region29
    $region28: #{tpu_custom_call.1} parent=1 // pred_region
      _
    $region29: #{tpu_custom_call.1} parent=1 // pred_fallthru
      _
    // Predicated region
    $region30: #{tpu_custom_call.1} parent=1 // pred_check
      _
    $region31: #{tpu_custom_call.1} parent=1 // pred_check_branch
      %31 = sbr.rel (0) target = $region33
    $region32: #{tpu_custom_call.1} parent=1 // pred_region
      _
    $region33: #{tpu_custom_call.1} parent=1 // pred_fallthru
      _
    // Predicated region
    $region34: #{tpu_custom_call.1} parent=1 // pred_check
      _
    $region35: #{tpu_custom_call.1} parent=1 // pred_check_branch
      %33 = sbr.rel (0) target = $region37
    $region36: #{tpu_custom_call.1} parent=1 // pred_region
      _
    $region37: #{tpu_custom_call.1} parent=1 // pred_fallthru
      _
    // Predicated region
    $region38: #{tpu_custom_call.1} parent=1 // pred_check
      _
    $region39: #{tpu_custom_call.1} parent=1 // pred_check_branch
      %35 = sbr.rel (0) target = $region41
    $region40: #{tpu_custom_call.1} parent=1 // pred_region
      _
    $region41: #{tpu_custom_call.1} parent=1 // pred_fallthru
      _
    %v37 = vld [vmem:[%s0] sm:$0xff]
    %v38 = vld [vmem:[%s0 + $0x8] sm:$0xff]
    %v39 = vld [vmem:[%s0 + $0x10] sm:$0xff]
    %v40 = vld [vmem:[%s0 + $0x18] sm:$0xff]
    %v41 = vld [vmem:[%s0 + $0x20] sm:$0xff]
    %v42 = vld [vmem:[%s0 + $0x28] sm:$0xff]
    %v43 = vld [vmem:[%s0 + $0x30] sm:$0xff]
    %v44 = vld [vmem:[%s0 + $0x38] sm:$0xff]
    %v45 = vld [vmem:[%s0 + $0x40] sm:$0xff]
    %v46 = vld [vmem:[%s0 + $0x48] sm:$0xff]
    %v47 = vld [vmem:[%s0 + $0x50] sm:$0xff]
    %v48 = vld [vmem:[%s0 + $0x58] sm:$0xff]
    %v49 = vld [vmem:[%s0 + $0x60] sm:$0xff]
    %v50 = vld [vmem:[%s0 + $0x68] sm:$0xff]
    %v51 = vpack.c.bf16 %v44, %v37
    %v52 = vpack.c.bf16 %v45, %v38
    %v53 = vpack.c.bf16 %v46, %v39
    %v54 = vpack.c.bf16 %v47, %v40
    %v55 = vpack.c.bf16 %v48, %v41
    %v56 = vpack.c.bf16 %v49, %v42
    %v57 = vpack.c.bf16 %v50, %v43
    %v58 = vld [vmem:[%s2] sm:$0xf]
    %v59 = vld [vmem:[%s2 + $0x4] sm:$0xf]
    %v60 = vld [vmem:[%s2 + $0x8] sm:$0xf]
    %v61 = vld [vmem:[%s2 + $0xc] sm:$0xf]
    %v62 = vld [vmem:[%s2 + $0x10] sm:$0xf]
    %v63 = vld [vmem:[%s2 + $0x14] sm:$0xf]
    %v64 = vld [vmem:[%s2 + $0x18] sm:$0xf]
    %v65 = vld [vmem:[%s2 + $0x1c] sm:$0xf]
    %v66 = vld [vmem:[%s2 + $0x20] sm:$0xf]
    %v67 = vld [vmem:[%s2 + $0x24] sm:$0xf]
    %v68 = vld [vmem:[%s2 + $0x28] sm:$0xf]
    %v69 = vld [vmem:[%s2 + $0x2c] sm:$0xf]
    %v70 = vld [vmem:[%s2 + $0x30] sm:$0xf]
    %v71 = vld [vmem:[%s2 + $0x34] sm:$0xf]
    %v72 = vld [vmem:[%s2 + $0x38] sm:$0xf]
    %v73 = vld [vmem:[%s2 + $0x3c] sm:$0xf]
    %v74 = vld [vmem:[%s2 + $0x40] sm:$0xf]
    %v75 = vld [vmem:[%s2 + $0x44] sm:$0xf]
    %v76 = vld [vmem:[%s2 + $0x48] sm:$0xf]
    %v77 = vld [vmem:[%s2 + $0x4c] sm:$0xf]
    %v78 = vld [vmem:[%s2 + $0x50] sm:$0xf]
    %v79 = vld [vmem:[%s2 + $0x54] sm:$0xf]
    %v80 = vld [vmem:[%s2 + $0x58] sm:$0xf]
    %v81 = vld [vmem:[%s2 + $0x5c] sm:$0xf]
    %v82 = vld [vmem:[%s2 + $0x60] sm:$0xf]
    %v83 = vld [vmem:[%s2 + $0x64] sm:$0xf]
    %v84 = vld [vmem:[%s2 + $0x68] sm:$0xf]
    %v85 = vld [vmem:[%s2 + $0x6c] sm:$0xf]
    %v86 = vld [vmem:[%s2 + $0x70] sm:$0xf]
    %v87 = vld [vmem:[%s2 + $0x74] sm:$0xf]
    %v88 = vld [vmem:[%s2 + $0x78] sm:$0xf]
    %v89 = vld [vmem:[%s2 + $0x7c] sm:$0xf]
    %v90 = vld [vmem:[%s2 + $0x80] sm:$0xf]
    %v91 = vld [vmem:[%s2 + $0x84] sm:$0xf]
    %v92 = vld [vmem:[%s2 + $0x88] sm:$0xf]
    %v93 = vld [vmem:[%s2 + $0x8c] sm:$0xf]
    %v94 = vld [vmem:[%s2 + $0x90] sm:$0xf]
    %v95 = vld [vmem:[%s2 + $0x94] sm:$0xf]
    %v96 = vld [vmem:[%s2 + $0x98] sm:$0xf]
    %v97 = vld [vmem:[%s2 + $0x9c] sm:$0xf]
    %v98 = vld [vmem:[%s2 + $0xa0] sm:$0xf]
    %v99 = vld [vmem:[%s2 + $0xa4] sm:$0xf]
    %v100 = vld [vmem:[%s2 + $0xa8] sm:$0xf]
    %v101 = vld [vmem:[%s2 + $0xac] sm:$0xf]
    %v102 = vld [vmem:[%s2 + $0xb0] sm:$0xf]
    %v103 = vld [vmem:[%s2 + $0xb4] sm:$0xf]
    %v104 = vld [vmem:[%s2 + $0xb8] sm:$0xf]
    %v105 = vld [vmem:[%s2 + $0xbc] sm:$0xf]
    %v106 = vld [vmem:[%s2 + $0xc0] sm:$0xf]
    %v107 = vld [vmem:[%s2 + $0xc4] sm:$0xf]
    %v108 = vld [vmem:[%s2 + $0xc8] sm:$0xf]
    %v109 = vld [vmem:[%s2 + $0xcc] sm:$0xf]
    %v110 = vld [vmem:[%s2 + $0xd0] sm:$0xf]
    %v111 = vld [vmem:[%s2 + $0xd4] sm:$0xf]
    %v112 = vld [vmem:[%s2 + $0xd8] sm:$0xf]
    %v113 = vld [vmem:[%s2 + $0xdc] sm:$0xf]
    %v114 = vld [vmem:[%s2 + $0xe0] sm:$0xf]
    %v115 = vld [vmem:[%s2 + $0xe4] sm:$0xf]
    %v116 = vld [vmem:[%s2 + $0xe8] sm:$0xf]
    %v117 = vld [vmem:[%s2 + $0xec] sm:$0xf]
    %v118 = vld [vmem:[%s2 + $0xf0] sm:$0xf]
    %v119 = vld [vmem:[%s2 + $0xf4] sm:$0xf]
    %v120 = vld [vmem:[%s2 + $0xf8] sm:$0xf]
    %v121 = vld [vmem:[%s2 + $0xfc] sm:$0xf]
    %v122 = vld [vmem:[%s2 + $0x100] sm:$0xf]
    %v123 = vld [vmem:[%s2 + $0x104] sm:$0xf]
    %v124 = vld [vmem:[%s2 + $0x108] sm:$0xf]
    %v125 = vld [vmem:[%s2 + $0x10c] sm:$0xf]
    %v126 = vld [vmem:[%s2 + $0x110] sm:$0xf]
    %v127 = vld [vmem:[%s2 + $0x114] sm:$0xf]
    %v128 = vld [vmem:[%s2 + $0x118] sm:$0xf]
    %v129 = vld [vmem:[%s2 + $0x11c] sm:$0xf]
    %v130 = vld [vmem:[%s2 + $0x120] sm:$0xf]
    %v131 = vld [vmem:[%s2 + $0x124] sm:$0xf]
    %v132 = vld [vmem:[%s2 + $0x128] sm:$0xf]
    %v133 = vld [vmem:[%s2 + $0x12c] sm:$0xf]
    %v134 = vld [vmem:[%s2 + $0x130] sm:$0xf]
    %v135 = vld [vmem:[%s2 + $0x134] sm:$0xf]
    %v136 = vld [vmem:[%s2 + $0x138] sm:$0xf]
    %v137 = vld [vmem:[%s2 + $0x13c] sm:$0xf]
    %v138 = vld [vmem:[%s2 + $0x140] sm:$0xf]
    %v139 = vld [vmem:[%s2 + $0x144] sm:$0xf]
    %v140 = vld [vmem:[%s2 + $0x148] sm:$0xf]
    %v141 = vld [vmem:[%s2 + $0x14c] sm:$0xf]
    %v142 = vld [vmem:[%s2 + $0x150] sm:$0xf]
    %v143 = vld [vmem:[%s2 + $0x154] sm:$0xf]
    %v144 = vld [vmem:[%s2 + $0x158] sm:$0xf]
    %v145 = vld [vmem:[%s2 + $0x15c] sm:$0xf]
    %v146 = vld [vmem:[%s2 + $0x160] sm:$0xf]
    %v147 = vld [vmem:[%s2 + $0x164] sm:$0xf]
    %v148 = vld [vmem:[%s2 + $0x168] sm:$0xf]
    %v149 = vld [vmem:[%s2 + $0x16c] sm:$0xf]
    %v150 = vld [vmem:[%s2 + $0x170] sm:$0xf]
    %v151 = vld [vmem:[%s2 + $0x174] sm:$0xf]
    %v152 = vld [vmem:[%s2 + $0x178] sm:$0xf]
    %v153 = vld [vmem:[%s2 + $0x17c] sm:$0xf]
    %v154 = vld [vmem:[%s2 + $0x180] sm:$0xf]
    %v155 = vld [vmem:[%s2 + $0x184] sm:$0xf]
    %v156 = vld [vmem:[%s3] sm:$0x1]
    %v158 = vperm.slane %v156, 0
    %v258 = vunpack.c.l.b16 %v58
    %v259 = vunpack.c.l.b16 %v59
    %v260 = vunpack.c.l.b16 %v60
    %v261 = vunpack.c.l.b16 %v61
    %v262 = vunpack.c.l.b16 %v62
    %v263 = vunpack.c.l.b16 %v63
    %v264 = vunpack.c.l.b16 %v64
    %v265 = vunpack.c.l.b16 %v65
    %v266 = vunpack.c.l.b16 %v66
    %v267 = vunpack.c.l.b16 %v67
    %v268 = vunpack.c.l.b16 %v68
    %v269 = vunpack.c.l.b16 %v69
    %v270 = vunpack.c.l.b16 %v70
    %v271 = vunpack.c.l.b16 %v71
    %v272 = vunpack.c.l.b16 %v72
    %v273 = vunpack.c.l.b16 %v73
    %v274 = vunpack.c.l.b16 %v74
    %v275 = vunpack.c.l.b16 %v75
    %v276 = vunpack.c.l.b16 %v76
    %v277 = vunpack.c.l.b16 %v77
    %v278 = vunpack.c.l.b16 %v78
    %v279 = vunpack.c.l.b16 %v79
    %v280 = vunpack.c.l.b16 %v80
    %v281 = vunpack.c.l.b16 %v81
    %v282 = vunpack.c.l.b16 %v82
    %v283 = vunpack.c.l.b16 %v83
    %v284 = vunpack.c.l.b16 %v84
    %v285 = vunpack.c.l.b16 %v85
    %v286 = vunpack.c.l.b16 %v86
    %v287 = vunpack.c.l.b16 %v87
    %v288 = vunpack.c.l.b16 %v88
    %v289 = vunpack.c.l.b16 %v89
    %v290 = vunpack.c.l.b16 %v90
    %v291 = vunpack.c.l.b16 %v91
    %v292 = vunpack.c.l.b16 %v92
    %v293 = vunpack.c.l.b16 %v93
    %v294 = vunpack.c.l.b16 %v94
    %v295 = vunpack.c.l.b16 %v95
    %v296 = vunpack.c.l.b16 %v96
    %v297 = vunpack.c.l.b16 %v97
    %v298 = vunpack.c.l.b16 %v98
    %v299 = vunpack.c.l.b16 %v99
    %v300 = vunpack.c.l.b16 %v100
    %v301 = vunpack.c.l.b16 %v101
    %v302 = vunpack.c.l.b16 %v102
    %v303 = vunpack.c.l.b16 %v103
    %v304 = vunpack.c.l.b16 %v104
    %v305 = vunpack.c.l.b16 %v105
    %v306 = vunpack.c.l.b16 %v106
    %v307 = vunpack.c.l.b16 %v107
    %v308 = vunpack.c.l.b16 %v108
    %v309 = vunpack.c.l.b16 %v109
    %v310 = vunpack.c.l.b16 %v110
    %v311 = vunpack.c.l.b16 %v111
    %v312 = vunpack.c.l.b16 %v112
    %v313 = vunpack.c.l.b16 %v113
    %v314 = vunpack.c.l.b16 %v114
    %v315 = vunpack.c.l.b16 %v115
    %v316 = vunpack.c.l.b16 %v116
    %v317 = vunpack.c.l.b16 %v117
    %v318 = vunpack.c.l.b16 %v118
    %v319 = vunpack.c.l.b16 %v119
    %v320 = vunpack.c.l.b16 %v120
    %v321 = vunpack.c.l.b16 %v121
    %v322 = vunpack.c.l.b16 %v122
    %v323 = vunpack.c.l.b16 %v123
    %v324 = vunpack.c.l.b16 %v124
    %v325 = vunpack.c.l.b16 %v125
    %v326 = vunpack.c.l.b16 %v126
    %v327 = vunpack.c.l.b16 %v127
    %v328 = vunpack.c.l.b16 %v128
    %v329 = vunpack.c.l.b16 %v129
    %v330 = vunpack.c.l.b16 %v130
    %v331 = vunpack.c.l.b16 %v131
    %v332 = vunpack.c.l.b16 %v132
    %v333 = vunpack.c.l.b16 %v133
    %v334 = vunpack.c.l.b16 %v134
    %v335 = vunpack.c.l.b16 %v135
    %v336 = vunpack.c.l.b16 %v136
    %v337 = vunpack.c.l.b16 %v137
    %v338 = vunpack.c.l.b16 %v138
    %v339 = vunpack.c.l.b16 %v139
    %v340 = vunpack.c.l.b16 %v140
    %v341 = vunpack.c.l.b16 %v141
    %v342 = vunpack.c.l.b16 %v142
    %v343 = vunpack.c.l.b16 %v143
    %v344 = vunpack.c.l.b16 %v144
    %v345 = vunpack.c.l.b16 %v145
    %v346 = vunpack.c.l.b16 %v146
    %v347 = vunpack.c.l.b16 %v147
    %v348 = vunpack.c.l.b16 %v148
    %v349 = vunpack.c.l.b16 %v149
    %v350 = vunpack.c.l.b16 %v150
    %v351 = vunpack.c.l.b16 %v151
    %v352 = vunpack.c.l.b16 %v152
    %v353 = vunpack.c.l.b16 %v153
    %v354 = vunpack.c.l.b16 %v154
    %v355 = vunpack.c.l.b16 %v155
    %v356 = vpack.c.b16 %v259, %v258
    %v357 = vpack.c.b16 %v261, %v260
    %v358 = vpack.c.b16 %v263, %v262
    %v359 = vpack.c.b16 %v265, %v264
    %v360 = vpack.c.b16 %v267, %v266
    %v361 = vpack.c.b16 %v269, %v268
    %v362 = vpack.c.b16 %v271, %v270
    %v363 = vpack.c.b16 %v273, %v272
    %v364 = vpack.c.b16 %v275, %v274
    %v365 = vpack.c.b16 %v277, %v276
    %v366 = vpack.c.b16 %v279, %v278
    %v367 = vpack.c.b16 %v281, %v280
    %v368 = vpack.c.b16 %v283, %v282
    %v369 = vpack.c.b16 %v285, %v284
    %v370 = vpack.c.b16 %v287, %v286
    %v371 = vpack.c.b16 %v289, %v288
    %v372 = vpack.c.b16 %v291, %v290
    %v373 = vpack.c.b16 %v293, %v292
    %v374 = vpack.c.b16 %v295, %v294
    %v375 = vpack.c.b16 %v297, %v296
    %v376 = vpack.c.b16 %v299, %v298
    %v377 = vpack.c.b16 %v301, %v300
    %v378 = vpack.c.b16 %v303, %v302
    %v379 = vpack.c.b16 %v305, %v304
    %v380 = vpack.c.b16 %v307, %v306
    %v381 = vpack.c.b16 %v309, %v308
    %v382 = vpack.c.b16 %v311, %v310
    %v383 = vpack.c.b16 %v313, %v312
    %v384 = vpack.c.b16 %v315, %v314
    %v385 = vpack.c.b16 %v317, %v316
    %v386 = vpack.c.b16 %v319, %v318
    %v387 = vpack.c.b16 %v321, %v320
    %v388 = vpack.c.b16 %v323, %v322
    %v389 = vpack.c.b16 %v325, %v324
    %v390 = vpack.c.b16 %v327, %v326
    %v391 = vpack.c.b16 %v329, %v328
    %v392 = vpack.c.b16 %v331, %v330
    %v393 = vpack.c.b16 %v333, %v332
    %v394 = vpack.c.b16 %v335, %v334
    %v395 = vpack.c.b16 %v337, %v336
    %v396 = vpack.c.b16 %v339, %v338
    %v397 = vpack.c.b16 %v341, %v340
    %v398 = vpack.c.b16 %v343, %v342
    %v399 = vpack.c.b16 %v345, %v344
    %v400 = vpack.c.b16 %v347, %v346
    %v401 = vpack.c.b16 %v349, %v348
    %v402 = vpack.c.b16 %v351, %v350
    %v403 = vpack.c.b16 %v353, %v352
    %v404 = vpack.c.b16 %v355, %v354
    %vm454 = vcmask 130048
    %v456 = vsel %vm454, %v57, 0
    %458 = vmatpush.bf16.msra.mxu0 %v363
    %459 = vmatpush.bf16.msra.mxu0 %v362
    %460 = vmatpush.bf16.msra.mxu0 %v361
    %461 = vmatpush.bf16.msra.mxu0 %v360
    %462 = vmatpush.bf16.msra.mxu0 %v359
    %463 = vmatpush.bf16.msra.mxu0 %v358
    %464 = vmatpush.bf16.msra.mxu0 %v357
    %465 = vmatpush.bf16.msra.mxu0 %v356
    %466 = vmatmul.bf16.gmra.mxu0 %v51
    %v467 = vpop.f32.mrf.mxu0
    %v468 = vadd.f32 %v158, %v467
    %v469 = vpop.f32.mrf.mxu0
    %v470 = vadd.f32 %v158, %v469
    %471 = vdwg.mxu0
    %472 = vmatpush.bf16.msra.mxu0 %v371
    %473 = vmatpush.bf16.msra.mxu0 %v370
    %474 = vmatpush.bf16.msra.mxu0 %v369
    %475 = vmatpush.bf16.msra.mxu0 %v368
    %476 = vmatpush.bf16.msra.mxu0 %v367
    %477 = vmatpush.bf16.msra.mxu0 %v366
    %478 = vmatpush.bf16.msra.mxu0 %v365
    %479 = vmatpush.bf16.msra.mxu0 %v364
    %480 = vmatmul.bf16.gmra.mxu0 %v52
    %v481 = vpop.f32.mrf.mxu0
    %v482 = vadd.f32 %v468, %v481
    %v483 = vpop.f32.mrf.mxu0
    %v484 = vadd.f32 %v470, %v483
    %485 = vdwg.mxu0
    %486 = vmatpush.bf16.msra.mxu0 %v379
    %487 = vmatpush.bf16.msra.mxu0 %v378
    %488 = vmatpush.bf16.msra.mxu0 %v377
    %489 = vmatpush.bf16.msra.mxu0 %v376
    %490 = vmatpush.bf16.msra.mxu0 %v375
    %491 = vmatpush.bf16.msra.mxu0 %v374
    %492 = vmatpush.bf16.msra.mxu0 %v373
    %493 = vmatpush.bf16.msra.mxu0 %v372
    %494 = vmatmul.bf16.gmra.mxu0 %v53
    %v495 = vpop.f32.mrf.mxu0
    %v496 = vadd.f32 %v482, %v495
    %v497 = vpop.f32.mrf.mxu0
    %v498 = vadd.f32 %v484, %v497
    %499 = vdwg.mxu0
    %500 = vmatpush.bf16.msra.mxu0 %v387
    %501 = vmatpush.bf16.msra.mxu0 %v386
    %502 = vmatpush.bf16.msra.mxu0 %v385
    %503 = vmatpush.bf16.msra.mxu0 %v384
    %504 = vmatpush.bf16.msra.mxu0 %v383
    %505 = vmatpush.bf16.msra.mxu0 %v382
    %506 = vmatpush.bf16.msra.mxu0 %v381
    %507 = vmatpush.bf16.msra.mxu0 %v380
    %508 = vmatmul.bf16.gmra.mxu0 %v54
    %v509 = vpop.f32.mrf.mxu0
    %v510 = vadd.f32 %v496, %v509
    %v511 = vpop.f32.mrf.mxu0
    %v512 = vadd.f32 %v498, %v511
    %513 = vdwg.mxu0
    %514 = vmatpush.bf16.msra.mxu0 %v395
    %515 = vmatpush.bf16.msra.mxu0 %v394
    %516 = vmatpush.bf16.msra.mxu0 %v393
    %517 = vmatpush.bf16.msra.mxu0 %v392
    %518 = vmatpush.bf16.msra.mxu0 %v391
    %519 = vmatpush.bf16.msra.mxu0 %v390
    %520 = vmatpush.bf16.msra.mxu0 %v389
    %521 = vmatpush.bf16.msra.mxu0 %v388
    %522 = vmatmul.bf16.gmra.mxu0 %v55
    %v523 = vpop.f32.mrf.mxu0
    %v524 = vadd.f32 %v510, %v523
    %v525 = vpop.f32.mrf.mxu0
    %v526 = vadd.f32 %v512, %v525
    %527 = vdwg.mxu0
    %528 = vmatpush.bf16.msra.mxu0 %v403
    %529 = vmatpush.bf16.msra.mxu0 %v402
    %530 = vmatpush.bf16.msra.mxu0 %v401
    %531 = vmatpush.bf16.msra.mxu0 %v400
    %532 = vmatpush.bf16.msra.mxu0 %v399
    %533 = vmatpush.bf16.msra.mxu0 %v398
    %534 = vmatpush.bf16.msra.mxu0 %v397
    %535 = vmatpush.bf16.msra.mxu0 %v396
    %536 = vmatmul.bf16.gmra.mxu0 %v56
    %v537 = vpop.f32.mrf.mxu0
    %v538 = vadd.f32 %v524, %v537
    %v539 = vpop.f32.mrf.mxu0
    %v540 = vadd.f32 %v526, %v539
    %541 = vdwg.mxu0
    %542 = vmatpush.bf16.msra.mxu0 0
    %543 = vmatpush.bf16.msra.mxu0 0
    %544 = vmatpush.bf16.msra.mxu0 0
    %545 = vmatpush.bf16.msra.mxu0 0
    %546 = vmatpush.bf16.msra.mxu0 0
    %547 = vmatpush.bf16.msra.mxu0 0
    %548 = vmatpush.bf16.msra.mxu0 0
    %549 = vmatpush.bf16.msra.mxu0 %v404
    %550 = vmatmul.bf16.gmra.mxu0 %v456
    %v551 = vpop.f32.mrf.mxu0
    %v552 = vadd.f32 %v538, %v551
    %v553 = vpop.f32.mrf.mxu0
    %v554 = vadd.f32 %v540, %v553
    %555 = vdwg.mxu0
    %v556 = vxor.u32 %v552, 2147483648
    %v557 = vxor.u32 %v554, 2147483648
    %v558 = vmul.f32 %v556, 1.442695
    %v559 = vpow.pop %v558
    %v560 = vmul.f32 %v557, 1.442695
    %v561 = vpow.pop %v560
    %v562 = vadd.f32 %v559, 1.0
    %v563 = vadd.f32 %v561, 1.0
    %v564 = vrcp.pop %v562
    %v565 = vmul.f32 %v562, %v564
    %v566 = vsub.f32 1.0, %v565
    %v567 = vmul.f32 %v564, %v566
    %v568 = vadd.f32 %v564, %v567
    %vm569 = vweird.f32 %v562
    %vm570 = vweird.f32 %v564
    %vm571 = vmor %vm569, %vm570
    %v572 = vsel %vm571, %v564, %v568
    %v573 = vand.u32 2147483647, %v562
    %vm574 = vcmp.eq.f32.partialorder %v573, 8.507059e+37
    %v575 = vand.u32 %v562, 2147483648
    %v576 = vor.u32 1.1754944e-38, %v575
    %v577 = vsel %vm574, %v576, %v572
    %v578 = vmul.f32 1.0, %v577
    %v579 = vrcp.pop %v563
    %v580 = vmul.f32 %v563, %v579
    %v581 = vsub.f32 1.0, %v580
    %v582 = vmul.f32 %v579, %v581
    %v583 = vadd.f32 %v579, %v582
    %vm584 = vweird.f32 %v563
    %vm585 = vweird.f32 %v579
    %vm586 = vmor %vm584, %vm585
    %v587 = vsel %vm586, %v579, %v583
    %v588 = vand.u32 2147483647, %v563
    %vm589 = vcmp.eq.f32.partialorder %v588, 8.507059e+37
    %v590 = vand.u32 %v563, 2147483648
    %v591 = vor.u32 1.1754944e-38, %v590
    %v592 = vsel %vm589, %v591, %v587
    %v593 = vmul.f32 1.0, %v592
    %v594 = vld [vmem:[%s4] sm:$0xff]
    %v595 = vld [vmem:[%s4 + $0x8] sm:$0xff]
    %v596 = vld [vmem:[%s4 + $0x10] sm:$0xff]
    %v597 = vld [vmem:[%s4 + $0x18] sm:$0xff]
    %v598 = vld [vmem:[%s5] sm:$0x1]
    %v600 = vperm.slane %v598, 0
    %vm602 = vcmask 261120
    %v604 = vsel %vm602, %v578, 0
    %v607 = vsel %vm602, %v593, 0
    %609 = vmatpush.msra.mxu0 0.0
    %610 = vmatpush.msra.mxu0 0.0
    %611 = vmatpush.msra.mxu0 0.0
    %612 = vmatpush.msra.mxu0 0.0
    %613 = vmatpush.msra.mxu0 0.0
    %614 = vmatpush.msra.mxu0 0.0
    %615 = vmatpush.msra.mxu0 0.0
    %616 = vmatpush.msra.mxu0 0.0
    %617 = vmatpush.msra.mxu0 0.0
    %618 = vmatpush.msra.mxu0 0.0
    %619 = vmatpush.msra.mxu0 0.0
    %620 = vmatpush.msra.mxu0 0.0
    %621 = vmatpush.msra.mxu0 %v597
    %622 = vmatpush.msra.mxu0 %v596
    %623 = vmatpush.msra.mxu0 %v595
    %624 = vmatpush.msra.mxu0 %v594
    %625 = vmatmul.f32.gmra.mxu0 %v604
    %v626 = vpop.f32.mrf.mxu0
    %v627 = vadd.f32 %v600, %v626
    %628 = vmatmul.f32.gmra.mxu0 %v607
    %v629 = vpop.f32.mrf.mxu0
    %v630 = vadd.f32 %v600, %v629
    %631 = vdwg.mxu0
    %v632 = vld [vmem:[%s1] sm:$0xff]
    %v633 = vld [vmem:[%s1 + $0x8] sm:$0xff]
    %v634 = vadd.f32 %v627, %v632
    %v635 = vadd.f32 %v630, %v633
    %v636 = vld [vmem:[%s7] sm:$0x1]
    %v637 = vld [vmem:[%s6] sm:$0x1]
    %639 = vset.pattern.permute.xlu0 0
    %640 = vperm.xlu0 %639, %v634
    %v641 = vpop.permute.xlu0 %640
    %644 = vset.pattern.permute.xlu0 0
    %645 = vperm.xlu0 %644, %v635
    %v646 = vpop.permute.xlu0 %645
    %v648 = vperm.slane %v637, 0
    %v649 = vmul.f32 %v641, %v648
    %v650 = vmul.f32 %v646, %v648
    %v652 = vperm.slane %v636, 0
    %v654 = vadd.f32 %v652, %v649
    %v655 = vadd.f32 %v652, %v650
    %v656 = vld [vmem:[%s6 + $0x1] sm:$0x1]
    %657 = vset.pattern.permute.xlu0 1
    %658 = vperm.xlu0 %657, %v634
    %v659 = vpop.permute.xlu0 %658
    %661 = vset.pattern.permute.xlu0 1
    %662 = vperm.xlu0 %661, %v635
    %v663 = vpop.permute.xlu0 %662
    %v665 = vperm.slane %v656, 0
    %v666 = vmul.f32 %v659, %v665
    %v667 = vmul.f32 %v663, %v665
    %v668 = vadd.f32 %v654, %v666
    %v669 = vadd.f32 %v655, %v667
    %v670 = vpack.c.bf16 %v669, %v668
    %v671 = vld [vmem:[%s8] sm:$0xff]
    %v672 = vld [vmem:[%s8 + $0x8] sm:$0xff]
    %v673 = vld [vmem:[%s8 + $0x10] sm:$0xff]
    %v674 = vld [vmem:[%s8 + $0x18] sm:$0xf]
    %v675 = vld [vmem:[%s8 + $0x1c] sm:$0xff]
    %v676 = vld [vmem:[%s8 + $0x24] sm:$0xff]
    %v677 = vld [vmem:[%s8 + $0x2c] sm:$0xff]
    %v678 = vld [vmem:[%s8 + $0x34] sm:$0xf]
    %v679 = vld [vmem:[%s8 + $0x38] sm:$0xff]
    %v680 = vld [vmem:[%s8 + $0x40] sm:$0xff]
    %v681 = vld [vmem:[%s8 + $0x48] sm:$0xff]
    %v682 = vld [vmem:[%s8 + $0x50] sm:$0xf]
    %v683 = vld [vmem:[%s8 + $0x54] sm:$0xff]
    %v684 = vld [vmem:[%s8 + $0x5c] sm:$0xff]
    %v685 = vld [vmem:[%s8 + $0x64] sm:$0xff]
    %v686 = vld [vmem:[%s8 + $0x6c] sm:$0xf]
    %v687 = vld [vmem:[%s8 + $0x70] sm:$0xff]
    %v688 = vld [vmem:[%s8 + $0x78] sm:$0xff]
    %v689 = vld [vmem:[%s8 + $0x80] sm:$0xff]
    %v690 = vld [vmem:[%s8 + $0x88] sm:$0xf]
    %v691 = vld [vmem:[%s8 + $0x8c] sm:$0xff]
    %v692 = vld [vmem:[%s8 + $0x94] sm:$0xff]
    %v693 = vld [vmem:[%s8 + $0x9c] sm:$0xff]
    %v694 = vld [vmem:[%s8 + $0xa4] sm:$0xf]
    %v695 = vld [vmem:[%s8 + $0xa8] sm:$0xff]
    %v696 = vld [vmem:[%s8 + $0xb0] sm:$0xff]
    %v697 = vld [vmem:[%s8 + $0xb8] sm:$0xff]
    %v698 = vld [vmem:[%s8 + $0xc0] sm:$0xf]
    %v699 = vld [vmem:[%s8 + $0xc4] sm:$0xff]
    %v700 = vld [vmem:[%s8 + $0xcc] sm:$0xff]
    %v701 = vld [vmem:[%s8 + $0xd4] sm:$0xff]
    %v702 = vld [vmem:[%s8 + $0xdc] sm:$0xf]
    %v703 = vld [vmem:[%s9] sm:$0x7f]
    %v705 = vperm.slane %v703, 0
    %v706 = vperm.slane %v703, 1
    %v707 = vperm.slane %v703, 2
    %v708 = vperm.slane %v703, 3
    %v709 = vperm.slane %v703, 4
    %v710 = vperm.slane %v703, 5
    %v711 = vperm.slane %v703, 6
    %v751 = vunpack.c.l.b16 %v671
    %v752 = vunpack.c.h.b16 %v671
    %v753 = vunpack.c.l.b16 %v672
    %v754 = vunpack.c.h.b16 %v672
    %v755 = vunpack.c.l.b16 %v673
    %v756 = vunpack.c.h.b16 %v673
    %v757 = vunpack.c.l.b16 %v674
    %v758 = vunpack.c.l.b16 %v675
    %v759 = vunpack.c.h.b16 %v675
    %v760 = vunpack.c.l.b16 %v676
    %v761 = vunpack.c.h.b16 %v676
    %v762 = vunpack.c.l.b16 %v677
    %v763 = vunpack.c.h.b16 %v677
    %v764 = vunpack.c.l.b16 %v678
    %v765 = vunpack.c.l.b16 %v679
    %v766 = vunpack.c.h.b16 %v679
    %v767 = vunpack.c.l.b16 %v680
    %v768 = vunpack.c.h.b16 %v680
    %v769 = vunpack.c.l.b16 %v681
    %v770 = vunpack.c.h.b16 %v681
    %v771 = vunpack.c.l.b16 %v682
    %v772 = vunpack.c.l.b16 %v683
    %v773 = vunpack.c.h.b16 %v683
    %v774 = vunpack.c.l.b16 %v684
    %v775 = vunpack.c.h.b16 %v684
    %v776 = vunpack.c.l.b16 %v685
    %v777 = vunpack.c.h.b16 %v685
    %v778 = vunpack.c.l.b16 %v686
    %v779 = vunpack.c.l.b16 %v687
    %v780 = vunpack.c.h.b16 %v687
    %v781 = vunpack.c.l.b16 %v688
    %v782 = vunpack.c.h.b16 %v688
    %v783 = vunpack.c.l.b16 %v689
    %v784 = vunpack.c.h.b16 %v689
    %v785 = vunpack.c.l.b16 %v690
    %v786 = vunpack.c.l.b16 %v691
    %v787 = vunpack.c.h.b16 %v691
    %v788 = vunpack.c.l.b16 %v692
    %v789 = vunpack.c.h.b16 %v692
    %v790 = vunpack.c.l.b16 %v693
    %v791 = vunpack.c.h.b16 %v693
    %v792 = vunpack.c.l.b16 %v694
    %v793 = vunpack.c.l.b16 %v695
    %v794 = vunpack.c.h.b16 %v695
    %v795 = vunpack.c.l.b16 %v696
    %v796 = vunpack.c.h.b16 %v696
    %v797 = vunpack.c.l.b16 %v697
    %v798 = vunpack.c.h.b16 %v697
    %v799 = vunpack.c.l.b16 %v698
    %v800 = vunpack.c.l.b16 %v699
    %v801 = vunpack.c.h.b16 %v699
    %v802 = vunpack.c.l.b16 %v700
    %v803 = vunpack.c.h.b16 %v700
    %v804 = vunpack.c.l.b16 %v701
    %v805 = vunpack.c.h.b16 %v701
    %v806 = vunpack.c.l.b16 %v702
    %v807 = vpack.c.b16 %v758, %v751
    %v808 = vpack.c.b16 %v759, %v752
    %v809 = vpack.c.b16 %v760, %v753
    %v810 = vpack.c.b16 %v761, %v754
    %v811 = vpack.c.b16 %v762, %v755
    %v812 = vpack.c.b16 %v763, %v756
    %v813 = vpack.c.b16 %v764, %v757
    %v814 = vpack.c.b16 %v772, %v765
    %v815 = vpack.c.b16 %v773, %v766
    %v816 = vpack.c.b16 %v774, %v767
    %v817 = vpack.c.b16 %v775, %v768
    %v818 = vpack.c.b16 %v776, %v769
    %v819 = vpack.c.b16 %v777, %v770
    %v820 = vpack.c.b16 %v778, %v771
    %v821 = vpack.c.b16 %v786, %v779
    %v822 = vpack.c.b16 %v787, %v780
    %v823 = vpack.c.b16 %v788, %v781
    %v824 = vpack.c.b16 %v789, %v782
    %v825 = vpack.c.b16 %v790, %v783
    %v826 = vpack.c.b16 %v791, %v784
    %v827 = vpack.c.b16 %v792, %v785
    %v828 = vpack.c.b16 %v800, %v793
    %v829 = vpack.c.b16 %v801, %v794
    %v830 = vpack.c.b16 %v802, %v795
    %v831 = vpack.c.b16 %v803, %v796
    %v832 = vpack.c.b16 %v804, %v797
    %v833 = vpack.c.b16 %v805, %v798
    %v834 = vpack.c.b16 %v806, %v799
    %vm863 = vcmask 523264
    %v865 = vsel %vm863, %v670, 0
    %867 = vmatpush.bf16.msra.mxu0 0
    %868 = vmatpush.bf16.msra.mxu0 0
    %869 = vmatpush.bf16.msra.mxu0 0
    %870 = vmatpush.bf16.msra.mxu0 0
    %871 = vmatpush.bf16.msra.mxu0 %v828
    %872 = vmatpush.bf16.msra.mxu0 %v821
    %873 = vmatpush.bf16.msra.mxu0 %v814
    %874 = vmatpush.bf16.msra.mxu0 %v807
    %875 = vmatmul.bf16.gmra.mxu0 %v865
    %v876 = vpop.f32.mrf.mxu0
    %v877 = vadd.f32 %v705, %v876
    %v878 = vpop.f32.mrf.mxu0
    %v879 = vadd.f32 %v705, %v878
    %880 = vdwg.mxu0
    %881 = vmatpush.bf16.msra.mxu0 0
    %882 = vmatpush.bf16.msra.mxu0 0
    %883 = vmatpush.bf16.msra.mxu0 0
    %884 = vmatpush.bf16.msra.mxu0 0
    %885 = vmatpush.bf16.msra.mxu0 %v829
    %886 = vmatpush.bf16.msra.mxu0 %v822
    %887 = vmatpush.bf16.msra.mxu0 %v815
    %888 = vmatpush.bf16.msra.mxu0 %v808
    %889 = vmatmul.bf16.gmra.mxu0 %v865
    %v890 = vpop.f32.mrf.mxu0
    %v891 = vadd.f32 %v706, %v890
    %v892 = vpop.f32.mrf.mxu0
    %v893 = vadd.f32 %v706, %v892
    %894 = vdwg.mxu0
    %895 = vmatpush.bf16.msra.mxu0 0
    %896 = vmatpush.bf16.msra.mxu0 0
    %897 = vmatpush.bf16.msra.mxu0 0
    %898 = vmatpush.bf16.msra.mxu0 0
    %899 = vmatpush.bf16.msra.mxu0 %v830
    %900 = vmatpush.bf16.msra.mxu0 %v823
    %901 = vmatpush.bf16.msra.mxu0 %v816
    %902 = vmatpush.bf16.msra.mxu0 %v809
    %903 = vmatmul.bf16.gmra.mxu0 %v865
    %v904 = vpop.f32.mrf.mxu0
    %v905 = vadd.f32 %v707, %v904
    %v906 = vpop.f32.mrf.mxu0
    %v907 = vadd.f32 %v707, %v906
    %908 = vdwg.mxu0
    %909 = vmatpush.bf16.msra.mxu0 0
    %910 = vmatpush.bf16.msra.mxu0 0
    %911 = vmatpush.bf16.msra.mxu0 0
    %912 = vmatpush.bf16.msra.mxu0 0
    %913 = vmatpush.bf16.msra.mxu0 %v831
    %914 = vmatpush.bf16.msra.mxu0 %v824
    %915 = vmatpush.bf16.msra.mxu0 %v817
    %916 = vmatpush.bf16.msra.mxu0 %v810
    %917 = vmatmul.bf16.gmra.mxu0 %v865
    %v918 = vpop.f32.mrf.mxu0
    %v919 = vadd.f32 %v708, %v918
    %v920 = vpop.f32.mrf.mxu0
    %v921 = vadd.f32 %v708, %v920
    %922 = vdwg.mxu0
    %923 = vmatpush.bf16.msra.mxu0 0
    %924 = vmatpush.bf16.msra.mxu0 0
    %925 = vmatpush.bf16.msra.mxu0 0
    %926 = vmatpush.bf16.msra.mxu0 0
    %927 = vmatpush.bf16.msra.mxu0 %v832
    %928 = vmatpush.bf16.msra.mxu0 %v825
    %929 = vmatpush.bf16.msra.mxu0 %v818
    %930 = vmatpush.bf16.msra.mxu0 %v811
    %931 = vmatmul.bf16.gmra.mxu0 %v865
    %v932 = vpop.f32.mrf.mxu0
    %v933 = vadd.f32 %v709, %v932
    %v934 = vpop.f32.mrf.mxu0
    %v935 = vadd.f32 %v709, %v934
    %936 = vdwg.mxu0
    %937 = vmatpush.bf16.msra.mxu0 0
    %938 = vmatpush.bf16.msra.mxu0 0
    %939 = vmatpush.bf16.msra.mxu0 0
    %940 = vmatpush.bf16.msra.mxu0 0
    %941 = vmatpush.bf16.msra.mxu0 %v833
    %942 = vmatpush.bf16.msra.mxu0 %v826
    %943 = vmatpush.bf16.msra.mxu0 %v819
    %944 = vmatpush.bf16.msra.mxu0 %v812
    %945 = vmatmul.bf16.gmra.mxu0 %v865
    %v946 = vpop.f32.mrf.mxu0
    %v947 = vadd.f32 %v710, %v946
    %v948 = vpop.f32.mrf.mxu0
    %v949 = vadd.f32 %v710, %v948
    %950 = vdwg.mxu0
    %951 = vmatpush.bf16.msra.mxu0 0
    %952 = vmatpush.bf16.msra.mxu0 0
    %953 = vmatpush.bf16.msra.mxu0 0
    %954 = vmatpush.bf16.msra.mxu0 0
    %955 = vmatpush.bf16.msra.mxu0 %v834
    %956 = vmatpush.bf16.msra.mxu0 %v827
    %957 = vmatpush.bf16.msra.mxu0 %v820
    %958 = vmatpush.bf16.msra.mxu0 %v813
    %959 = vmatmul.bf16.gmra.mxu0 %v865
    %v960 = vpop.f32.mrf.mxu0
    %v961 = vadd.f32 %v711, %v960
    %v962 = vpop.f32.mrf.mxu0
    %v963 = vadd.f32 %v711, %v962
    %964 = vdwg.mxu0
    %966 = vset.pattern.permute.xlu0 2
    %967 = vperm.xlu0 %966, %v627
    %v968 = vpop.permute.xlu0 %967
    %971 = vset.pattern.permute.xlu0 2
    %972 = vperm.xlu0 %971, %v630
    %v973 = vpop.permute.xlu0 %972
    %v975 = vmul.f32 %v877, %v968
    %v976 = vmul.f32 %v891, %v968
    %v977 = vmul.f32 %v905, %v968
    %v978 = vmul.f32 %v919, %v968
    %v979 = vmul.f32 %v933, %v968
    %v980 = vmul.f32 %v947, %v968
    %v981 = vmul.f32 %v961, %v968
    %v982 = vmul.f32 %v879, %v973
    %v983 = vmul.f32 %v893, %v973
    %v984 = vmul.f32 %v907, %v973
    %v985 = vmul.f32 %v921, %v973
    %v986 = vmul.f32 %v935, %v973
    %v987 = vmul.f32 %v949, %v973
    %v988 = vmul.f32 %v963, %v973
    %989 = vst [vmem:[#allocation2] sm:$0xff] %v975
    %990 = vst [vmem:[#allocation2 + $0x8] sm:$0xff] %v976
    %991 = vst [vmem:[#allocation2 + $0x10] sm:$0xff] %v977
    %992 = vst [vmem:[#allocation2 + $0x18] sm:$0xff] %v978
    %993 = vst [vmem:[#allocation2 + $0x20] sm:$0xff] %v979
    %994 = vst [vmem:[#allocation2 + $0x28] sm:$0xff] %v980
    %995 = vst.msk [vmem:[#allocation2 + $0x30] sm:$0xff] %vm454, %v981
    %996 = vst [vmem:[#allocation2 + $0x38] sm:$0xff] %v982
    %997 = vst [vmem:[#allocation2 + $0x40] sm:$0xff] %v983
    %998 = vst [vmem:[#allocation2 + $0x48] sm:$0xff] %v984
    %999 = vst [vmem:[#allocation2 + $0x50] sm:$0xff] %v985
    %1000 = vst [vmem:[#allocation2 + $0x58] sm:$0xff] %v986
    %1001 = vst [vmem:[#allocation2 + $0x60] sm:$0xff] %v987
    %1002 = vst.msk [vmem:[#allocation2 + $0x68] sm:$0xff] %vm454, %v988
    // Predicated region
    $region42: #{tpu_custom_call.1} parent=1 // pred_check
      _
    $region43: #{tpu_custom_call.1} parent=1 // pred_check_branch
      %1004 = sbr.rel (0) target = $region45
    $region44: #{tpu_custom_call.1} parent=1 // pred_region
      %1006 = vsyncadd [#allocation3], 0
      %s1007 = sshll.u32 [#allocation2], 4
      %s1008 = int_to_ptr.vmem [resolvable:$true] %s1007
      %s1009 = sshll.u32 %s10, 4
      %s1010 = int_to_ptr.hbm [resolvable:$true] %s1009
      %1015 = dma.vmem_to_hbm [thread:$0]  %s1008, 1792, %s1010, [#allocation3], 896, 896, 56
    $region45: #{tpu_custom_call.1} parent=1 // pred_fallthru
      _
    // Predicated region
    $region46: #{tpu_custom_call.1} parent=1 // pred_check
      _
    $region47: #{tpu_custom_call.1} parent=1 // pred_check_branch
      %1017 = sbr.rel (0) target = $region49
    $region48: #{tpu_custom_call.1} parent=1 // pred_region
      %1019 = dma.done [#allocation3], 1792
    $region49: #{tpu_custom_call.1} parent=1 // pred_fallthru
      _
    %1020 = vsyncpa [#allocation3], 1

</llo_original>
